<compile_context>
chip_gen: v5e
topology: v5e:2x2
jax: 0.10.0
libtpu: 0.0.40
codegen_flags: <defaults>
</compile_context>

<pallas_src>
import jax
import jax.numpy as jnp
from jax.experimental import pallas as pl
from jax.experimental.pallas import tpu as pltpu


def _round_up(x, m):
    return (x + m - 1) // m * m


def _logreg_kernel(feat_ref, gid_ref, ens_ref, w_ref, b_ref, fwe_ref,
                   sc_ref, out_ref):
    feats = feat_ref[...]                          # [TB, F] f32
    gid = gid_ref[...]                             # [TB, 1] i32
    ens = ens_ref[...]                             # [TB, 5] f32

    tb = feats.shape[0]
    num_groups = w_ref.shape[1]

    # scores[i, g] = <feats[i, :], w[g, :]>  -- K = F contraction on the MXU.
    scores = jnp.dot(feats, w_ref[...],
                     preferred_element_type=jnp.float32)        # [TB, G]

    # Per-row group select via a one-hot mask-sum on the VPU (G is tiny);
    # the group bias is folded into the same select.
    group_iota = jax.lax.broadcasted_iota(jnp.int32, (tb, num_groups), 1)
    onehot = (group_iota == gid).astype(jnp.float32)            # [TB, G]
    logit = jnp.sum(onehot * (scores + b_ref[...]),
                    axis=1, keepdims=True)                      # [TB, 1]

    # Logistic-regression head (exact sigmoid; EUP exp).
    lr = 1.0 / (1.0 + jnp.exp(-logit))                          # [TB, 1]

    # Collapsed final head + softmax:  softmax([a, b])[1] == sigmoid(b - a).
    fw_lr_diff = sc_ref[0]                                      # scalar
    fb_diff = sc_ref[1]                                         # scalar
    ens_contrib = jnp.sum(ens * fwe_ref[...], axis=1,
                          keepdims=True)                        # [TB, 1]
    z = lr * fw_lr_diff + ens_contrib + fb_diff                 # [TB, 1]
    out_ref[...] = 1.0 / (1.0 + jnp.exp(-z))                    # [TB, 1]


def logistic_regression_forward(features, group_number, ensemble,
                                w, b, final_w, final_b, *, tile_b=1024):
    """Eval-mode forward of LogisticRegressionModel (dropout disabled).

    Returns softmax(final_input @ final_w + final_b, dim=1)[:, 1] of shape [bs].
    """
    bs, feat_size = features.shape
    num_groups = w.shape[0]

    # Tile sizing: multiple of 8 rows, capped so the double-buffered feature
    # tile stays comfortably inside the default scoped-VMEM limit everywhere
    # (v7x: 64 MiB physical / 32 MiB scoped).  ~8 MiB budget for the feature
    # double-buffer leaves ample headroom for params / outputs / scratch.
    max_rows_for_vmem = max(8, (8 * 1024 * 1024) // (2 * 4 * feat_size))
    tile_b = min(int(tile_b), max_rows_for_vmem)
    tile_b = max(8, (tile_b // 8) * 8)
    tile_b = min(tile_b, _round_up(bs, 8))
    bs_p = _round_up(bs, tile_b)
    grid = (bs_p // tile_b,)

    feats = features.astype(jnp.float32)
    gid = group_number.astype(jnp.int32).reshape(bs, 1)
    ens = ensemble.astype(jnp.float32)
    if bs_p != bs:
        pad = bs_p - bs
        feats = jnp.pad(feats, ((0, pad), (0, 0)))
        gid = jnp.pad(gid, ((0, pad), (0, 0)))      # pad gid=0 (valid group)
        ens = jnp.pad(ens, ((0, pad), (0, 0)))

    # Parameter preprocessing (tiny, one-time, wrapper/XLA side).
    w_fg = w.reshape(num_groups, feat_size).T.astype(jnp.float32)   # [F, G]
    b_row = b.reshape(1, num_groups).astype(jnp.float32)            # [1, G]
    fw = final_w.astype(jnp.float32)                                # [6, 2]
    fb = final_b.reshape(2).astype(jnp.float32)                     # [2]
    fw_diff = fw[:, 1] - fw[:, 0]                                   # [6]
    fwe_row = fw_diff[1:6].reshape(1, 5)                            # [1, 5]
    scalars = jnp.stack([fw_diff[0], fb[1] - fb[0]]).astype(jnp.float32)  # [2]

    out = pl.pallas_call(
        _logreg_kernel,
        out_shape=jax.ShapeDtypeStruct((bs_p, 1), jnp.float32),
        grid=grid,
        in_specs=[
            # Batch-tiled, pipelined inputs.
            pl.BlockSpec((tile_b, feat_size), lambda i: (i, 0)),
            pl.BlockSpec((tile_b, 1), lambda i: (i, 0)),
            pl.BlockSpec((tile_b, 5), lambda i: (i, 0)),
            # VMEM-resident parameters (constant block index -> DMA'd once).
            pl.BlockSpec((feat_size, num_groups), lambda i: (0, 0)),
            pl.BlockSpec((1, num_groups), lambda i: (0, 0)),
            pl.BlockSpec((1, 5), lambda i: (0, 0)),
            # Two tail scalars via SMEM (no padded VMEM tile / DMA).
            pl.BlockSpec(memory_space=pltpu.MemorySpace.SMEM),
        ],
        out_specs=pl.BlockSpec((tile_b, 1), lambda i: (i, 0)),
        compiler_params=pltpu.CompilerParams(
            dimension_semantics=("parallel",)),
    )(feats, gid, ens, w_fg, b_row, fwe_row, scalars)

    return out[:bs, 0]                                               # [bs]


def _reference_forward(features, group_number, ensemble, w, b, final_w,
                       final_b):
    """Plain-JAX reference mirroring the PyTorch eval forward."""
    w_sel = w[group_number, :, 0]                                     # [bs, F]
    b_sel = b[group_number, 0]                                        # [bs]
    lr = jax.nn.sigmoid(jnp.sum(features * w_sel, axis=1) + b_sel)    # [bs]
    final_in = jnp.concatenate([lr[:, None], ensemble], axis=1)       # [bs, 6]
    out = final_in @ final_w + final_b                                # [bs, 2]
    return jax.nn.softmax(out, axis=1)[:, 1]


if __name__ == "__main__":
    key = jax.random.PRNGKey(0)
    k_feat, k_gid, k_ens, k_w, k_fw = jax.random.split(key, 5)

    bs = 8
    input_size = 32
    num_groups = 4

    # Eval-mode inputs: features [bs, F] float, group ids [bs] int,
    # ensemble [bs, 5] float (cat -> [bs, 6] matches final_w [6, 2]).
    features = jax.random.normal(k_feat, (bs, input_size), dtype=jnp.float32)
    group_number = jax.random.randint(k_gid, (bs,), 0, num_groups,
                                      dtype=jnp.int32)
    ensemble = jax.random.normal(k_ens, (bs, 5), dtype=jnp.float32)

    # Parameters with the module's __init__ shapes:
    #   w: randn(num_groups, input_size, 1), b: ones(num_groups, 1)
    #   final_w: randn(6, 2), final_b: ones(2)
    w = jax.random.normal(k_w, (num_groups, input_size, 1), dtype=jnp.float32)
    b = jnp.ones((num_groups, 1), dtype=jnp.float32)
    final_w = jax.random.normal(k_fw, (6, 2), dtype=jnp.float32)
    final_b = jnp.ones((2,), dtype=jnp.float32)

    out = logistic_regression_forward(features, group_number, ensemble,
                                      w, b, final_w, final_b)
    out = jax.block_until_ready(out)

    ref = _reference_forward(features, group_number, ensemble,
                             w, b, final_w, final_b)
    assert out.shape == (bs,)
    assert jnp.allclose(out, ref, atol=1e-5, rtol=1e-5), (out, ref)

    print("KERNEL_OK")
</pallas_src>

<mosaic_0001>
module attributes {stable_mosaic.version = 11 : i64} {
  func.func @_logreg_kernel(%arg0: i32, %arg1: memref<8x32xf32, #tpu.memory_space<vmem>>, %arg2: memref<8x1xi32, #tpu.memory_space<vmem>>, %arg3: memref<8x5xf32, #tpu.memory_space<vmem>>, %arg4: memref<32x4xf32, #tpu.memory_space<vmem>>, %arg5: memref<1x4xf32, #tpu.memory_space<vmem>>, %arg6: memref<1x5xf32, #tpu.memory_space<vmem>>, %arg7: memref<2xf32, #tpu.memory_space<smem>>, %arg8: memref<8x1xf32, #tpu.memory_space<vmem>>) attributes {dimension_semantics = [#tpu.dimension_semantics<parallel>], iteration_bounds = array<i64: 1>, scalar_prefetch = 0 : i64, scratch_operands = 0 : i64, tpu.core_type = #tpu.core_type<tc>, window_params = [{transform_indices = @transform_0, window_bounds = array<i64: 8, 32>}, {transform_indices = @transform_1, window_bounds = array<i64: 8, 1>}, {transform_indices = @transform_2, window_bounds = array<i64: 8, 5>}, {pipeline_mode = #tpu.pipeline_mode<synchronous>, transform_indices = @transform_3, window_bounds = array<i64: 32, 4>}, {pipeline_mode = #tpu.pipeline_mode<synchronous>, transform_indices = @transform_4, window_bounds = array<i64: 1, 4>}, {pipeline_mode = #tpu.pipeline_mode<synchronous>, transform_indices = @transform_5, window_bounds = array<i64: 1, 5>}, {transform_indices = @transform_6, window_bounds = array<i64: 2>}, {transform_indices = @transform_7, window_bounds = array<i64: 8, 1>}]} {
    %c0 = arith.constant 0 : index
    %c0_0 = arith.constant 0 : index
    %0 = vector.load %arg1[%c0, %c0_0] : memref<8x32xf32, #tpu.memory_space<vmem>>, vector<8x32xf32>
    %c0_1 = arith.constant 0 : index
    %c0_2 = arith.constant 0 : index
    %1 = vector.load %arg2[%c0_1, %c0_2] : memref<8x1xi32, #tpu.memory_space<vmem>>, vector<8x1xi32>
    %c0_3 = arith.constant 0 : index
    %c0_4 = arith.constant 0 : index
    %2 = vector.load %arg3[%c0_3, %c0_4] : memref<8x5xf32, #tpu.memory_space<vmem>>, vector<8x5xf32>
    %c0_5 = arith.constant 0 : index
    %c0_6 = arith.constant 0 : index
    %3 = vector.load %arg4[%c0_5, %c0_6] : memref<32x4xf32, #tpu.memory_space<vmem>>, vector<32x4xf32>
    %cst = arith.constant dense<0.000000e+00> : vector<8x4xf32>
    %4 = tpu.matmul %0, %3, %cst {dimension_numbers = #tpu.dot_dimension_numbers<[1], [0], [0], [1], [0, 0, 1, 1], [], []>} : vector<8x32xf32>, vector<32x4xf32>, vector<8x4xf32> -> vector<8x4xf32>
    %5 = tpu.iota {dimensions = array<i32: 1>} : vector<8x4xi32>
    %6 = vector.broadcast %1 : vector<8x1xi32> to vector<8x4xi32>
    %7 = arith.cmpi eq, %5, %6 : vector<8x4xi32>
    %8 = arith.extui %7 : vector<8x4xi1> to vector<8x4xi32>
    %9 = arith.sitofp %8 : vector<8x4xi32> to vector<8x4xf32>
    %c0_7 = arith.constant 0 : index
    %c0_8 = arith.constant 0 : index
    %10 = vector.load %arg5[%c0_7, %c0_8] : memref<1x4xf32, #tpu.memory_space<vmem>>, vector<1x4xf32>
    %11 = vector.broadcast %10 : vector<1x4xf32> to vector<8x4xf32>
    %12 = arith.addf %4, %11 : vector<8x4xf32>
    %13 = arith.mulf %9, %12 : vector<8x4xf32>
    %cst_9 = arith.constant dense<0.000000e+00> : vector<8xf32>
    %14 = vector.multi_reduction <add>, %13, %cst_9 [1] : vector<8x4xf32> to vector<8xf32>
    %15 = vector.shape_cast %14 : vector<8xf32> to vector<8x1xf32>
    %cst_10 = arith.constant 0.000000e+00 : f32
    %16 = vector.broadcast %cst_10 : f32 to vector<8x1xf32>
    %17 = arith.subf %16, %15 : vector<8x1xf32>
    %18 = math.exp %17 : vector<8x1xf32>
    %cst_11 = arith.constant 1.000000e+00 : f32
    %19 = vector.broadcast %cst_11 : f32 to vector<8x1xf32>
    %20 = arith.addf %19, %18 : vector<8x1xf32>
    %cst_12 = arith.constant 1.000000e+00 : f32
    %21 = vector.broadcast %cst_12 : f32 to vector<8x1xf32>
    %22 = arith.divf %21, %20 : vector<8x1xf32>
    %c0_13 = arith.constant 0 : index
    %23 = memref.load %arg7[%c0_13] : memref<2xf32, #tpu.memory_space<smem>>
    %c1 = arith.constant 1 : index
    %24 = memref.load %arg7[%c1] : memref<2xf32, #tpu.memory_space<smem>>
    %c0_14 = arith.constant 0 : index
    %c0_15 = arith.constant 0 : index
    %25 = vector.load %arg6[%c0_14, %c0_15] : memref<1x5xf32, #tpu.memory_space<vmem>>, vector<1x5xf32>
    %26 = vector.broadcast %25 : vector<1x5xf32> to vector<8x5xf32>
    %27 = arith.mulf %2, %26 : vector<8x5xf32>
    %cst_16 = arith.constant dense<0.000000e+00> : vector<8xf32>
    %28 = vector.multi_reduction <add>, %27, %cst_16 [1] : vector<8x5xf32> to vector<8xf32>
    %29 = vector.shape_cast %28 : vector<8xf32> to vector<8x1xf32>
    %30 = vector.broadcast %23 : f32 to vector<8x1xf32>
    %31 = arith.mulf %22, %30 : vector<8x1xf32>
    %32 = arith.addf %31, %29 : vector<8x1xf32>
    %33 = vector.broadcast %24 : f32 to vector<8x1xf32>
    %34 = arith.addf %32, %33 : vector<8x1xf32>
    %cst_17 = arith.constant 0.000000e+00 : f32
    %35 = vector.broadcast %cst_17 : f32 to vector<8x1xf32>
    %36 = arith.subf %35, %34 : vector<8x1xf32>
    %37 = math.exp %36 : vector<8x1xf32>
    %cst_18 = arith.constant 1.000000e+00 : f32
    %38 = vector.broadcast %cst_18 : f32 to vector<8x1xf32>
    %39 = arith.addf %38, %37 : vector<8x1xf32>
    %cst_19 = arith.constant 1.000000e+00 : f32
    %40 = vector.broadcast %cst_19 : f32 to vector<8x1xf32>
    %41 = arith.divf %40, %39 : vector<8x1xf32>
    %c0_20 = arith.constant 0 : index
    %c0_21 = arith.constant 0 : index
    %42 = vector.load %arg8[%c0_20, %c0_21] : memref<8x1xf32, #tpu.memory_space<vmem>>, vector<8x1xf32>
    tpu.vector_store %arg8[%c0_20, %c0_21], %41 {strides = array<i32>} : memref<8x1xf32, #tpu.memory_space<vmem>>, vector<8x1xf32>,
    return
  }
  func.func @transform_0(%arg0: i32) -> (i32, i32) {
    %c0_i32 = arith.constant 0 : i32
    %c0_i32_0 = arith.constant 0 : i32
    return %arg0, %c0_i32 : i32, i32
  }
  func.func @transform_1(%arg0: i32) -> (i32, i32) {
    %c0_i32 = arith.constant 0 : i32
    %c0_i32_0 = arith.constant 0 : i32
    return %arg0, %c0_i32 : i32, i32
  }
  func.func @transform_2(%arg0: i32) -> (i32, i32) {
    %c0_i32 = arith.constant 0 : i32
    %c0_i32_0 = arith.constant 0 : i32
    return %arg0, %c0_i32 : i32, i32
  }
  func.func @transform_3(%arg0: i32) -> (i32, i32) {
    %c0_i32 = arith.constant 0 : i32
    %c0_i32_0 = arith.constant 0 : i32
    %c0_i32_1 = arith.constant 0 : i32
    return %c0_i32, %c0_i32_0 : i32, i32
  }
  func.func @transform_4(%arg0: i32) -> (i32, i32) {
    %c0_i32 = arith.constant 0 : i32
    %c0_i32_0 = arith.constant 0 : i32
    %c0_i32_1 = arith.constant 0 : i32
    return %c0_i32, %c0_i32_0 : i32, i32
  }
  func.func @transform_5(%arg0: i32) -> (i32, i32) {
    %c0_i32 = arith.constant 0 : i32
    %c0_i32_0 = arith.constant 0 : i32
    %c0_i32_1 = arith.constant 0 : i32
    return %c0_i32, %c0_i32_0 : i32, i32
  }
  func.func @transform_6(%arg0: i32) -> i32 {
    %c0_i32 = arith.constant 0 : i32
    %c0_i32_0 = arith.constant 0 : i32
    return %c0_i32 : i32
  }
  func.func @transform_7(%arg0: i32) -> (i32, i32) {
    %c0_i32 = arith.constant 0 : i32
    %c0_i32_0 = arith.constant 0 : i32
    return %arg0, %c0_i32 : i32, i32
  }
}

</mosaic_0001>

<llo_original>
// kernel: tpu_custom_call.1
$region0: #{tpu_custom_call.1}
  #allocation0 [shape = 'u32[]', space=smem, size = 0x4, offset = 0x4, fixed_abs, tag = 'smem constant byte address 0x4 - core index']
  #allocation1 [shape = 'u32[72,128]{1,0:T(1,128)}', space=vmem, size = 0x9000, scoped, tag = 'internal scratch']
  %s0 = inlined_call_operand.vmem [shape: f32[8,32], index: 0, kind: input, shape index: {}]
  %s1 = inlined_call_operand.vmem [shape: s32[8,1], index: 1, kind: input, shape index: {}]
  %s2 = inlined_call_operand.vmem [shape: f32[8,5], index: 2, kind: input, shape index: {}]
  %s3 = inlined_call_operand.vmem [shape: f32[32,4], index: 3, kind: input, shape index: {}]
  %s4 = inlined_call_operand.vmem [shape: f32[1,4], index: 4, kind: input, shape index: {}]
  %s5 = inlined_call_operand.vmem [shape: f32[1,5], index: 5, kind: input, shape index: {}]
  %s6 = inlined_call_operand.vmem [shape: f32[2], index: 6, kind: input, shape index: {}]
  %s7 = inlined_call_operand.vmem [shape: f32[8,1], index: 7, kind: output, shape index: {}]
  %s8 = sld [smem:[#allocation0]]
  $region42: #{tpu_custom_call.1} parent=0
    _
  %s10 = ssub.s32 1, %s8
  %s11 = scalar_select 0, %s10, %s8
  $region1: #{tpu_custom_call.1} parent=0
    #allocation2 [shape = 'u8[512]{0}', space=smem, size = 0x200, scoped, tag = 'input window, operand 6, single buffered']
    #allocation3 [shape = 's32[1]{0}', space=sflag, size = 0x4, scoped, tag = 'scoped memory for tpu_custom_call.1']
    %12 = vsyncpa [#allocation3], 0
    // Predicated region
    $region2: #{tpu_custom_call.1} parent=1 // pred_check
      _
    $region3: #{tpu_custom_call.1} parent=1 // pred_check_branch
      %14 = sbr.rel (0) target = $region5
    $region4: #{tpu_custom_call.1} parent=1 // pred_region
      _
    $region5: #{tpu_custom_call.1} parent=1 // pred_fallthru
      _
    // Predicated region
    $region6: #{tpu_custom_call.1} parent=1 // pred_check
      _
    $region7: #{tpu_custom_call.1} parent=1 // pred_check_branch
      %16 = sbr.rel (0) target = $region9
    $region8: #{tpu_custom_call.1} parent=1 // pred_region
      _
    $region9: #{tpu_custom_call.1} parent=1 // pred_fallthru
      _
    // Predicated region
    $region10: #{tpu_custom_call.1} parent=1 // pred_check
      _
    $region11: #{tpu_custom_call.1} parent=1 // pred_check_branch
      %18 = sbr.rel (0) target = $region13
    $region12: #{tpu_custom_call.1} parent=1 // pred_region
      _
    $region13: #{tpu_custom_call.1} parent=1 // pred_fallthru
      _
    // Predicated region
    $region14: #{tpu_custom_call.1} parent=1 // pred_check
      _
    $region15: #{tpu_custom_call.1} parent=1 // pred_check_branch
      %20 = sbr.rel (0) target = $region17
    $region16: #{tpu_custom_call.1} parent=1 // pred_region
      _
    $region17: #{tpu_custom_call.1} parent=1 // pred_fallthru
      _
    // Predicated region
    $region18: #{tpu_custom_call.1} parent=1 // pred_check
      _
    $region19: #{tpu_custom_call.1} parent=1 // pred_check_branch
      %22 = sbr.rel (0) target = $region21
    $region20: #{tpu_custom_call.1} parent=1 // pred_region
      _
    $region21: #{tpu_custom_call.1} parent=1 // pred_fallthru
      _
    // Predicated region
    $region22: #{tpu_custom_call.1} parent=1 // pred_check
      _
    $region23: #{tpu_custom_call.1} parent=1 // pred_check_branch
      %24 = sbr.rel (0) target = $region25
    $region24: #{tpu_custom_call.1} parent=1 // pred_region
      _
    $region25: #{tpu_custom_call.1} parent=1 // pred_fallthru
      _
    // Predicated region
    $region26: #{tpu_custom_call.1} parent=1 // pred_check
      _
    $region27: #{tpu_custom_call.1} parent=1 // pred_check_branch
      %26 = sbr.rel (0) target = $region29
    $region28: #{tpu_custom_call.1} parent=1 // pred_region
      %28 = vsyncadd [#allocation3], 0
      %s30 = sshll.u32 %s6, 4
      %s31 = int_to_ptr.vmem [resolvable:$true] %s30
      %33 = dma.vmem_to_smem %s31, 16, [#allocation2], [#allocation3]
    $region29: #{tpu_custom_call.1} parent=1 // pred_fallthru
      _
    // Predicated region
    $region30: #{tpu_custom_call.1} parent=1 // pred_check
      _
    $region31: #{tpu_custom_call.1} parent=1 // pred_check_branch
      %35 = sbr.rel (0) target = $region33
    $region32: #{tpu_custom_call.1} parent=1 // pred_region
      %37 = dma.done [#allocation3], 16
    $region33: #{tpu_custom_call.1} parent=1 // pred_fallthru
      _
    %38 = sfence
    %v39 = vld [vmem:[%s0] sm:$0xff]
    %v40 = vld [vmem:[%s1] sm:$0xff]
    %v41 = vld [vmem:[%s2] sm:$0xff]
    %v42 = vld [vmem:[%s3] sm:$0xff]
    %v43 = vld [vmem:[%s3 + $0x8] sm:$0xff]
    %v44 = vld [vmem:[%s3 + $0x10] sm:$0xff]
    %v45 = vld [vmem:[%s3 + $0x18] sm:$0xff]
    %v46 = vlaneseq
    %v47 = vand.u32 %v46, 127
    %48 = vset.pattern.permute.xlu0 0
    %49 = vperm.xlu0 %48, %v40
    %v50 = vpop.permute.xlu0 %49
    %vm51 = vcmp.eq.s32.totalorder %v47, %v50
    %v52 = vsel %vm51, 1, 0
    %v53 = vcvt.s32.f32 %v52
    %v54 = vld [vmem:[%s4] sm:$0x1]
    %v56 = vperm.slane %v54, 0
    %vm58 = vcmask 261120
    %v60 = vsel %vm58, %v39, 0
    %62 = vmatpush.msra.mxu0 0.0
    %63 = vmatpush.msra.mxu0 0.0
    %64 = vmatpush.msra.mxu0 0.0
    %65 = vmatpush.msra.mxu0 0.0
    %66 = vmatpush.msra.mxu0 0.0
    %67 = vmatpush.msra.mxu0 0.0
    %68 = vmatpush.msra.mxu0 0.0
    %69 = vmatpush.msra.mxu0 0.0
    %70 = vmatpush.msra.mxu0 0.0
    %71 = vmatpush.msra.mxu0 0.0
    %72 = vmatpush.msra.mxu0 0.0
    %73 = vmatpush.msra.mxu0 0.0
    %74 = vmatpush.msra.mxu0 %v45
    %75 = vmatpush.msra.mxu0 %v44
    %76 = vmatpush.msra.mxu0 %v43
    %77 = vmatpush.msra.mxu0 %v42
    %78 = vmatmul.f32.gmra.mxu0 %v60
    %v79 = vpop.f32.mrf.mxu0
    %v80 = vadd.f32 %v56, %v79
    %81 = vdwg.mxu0
    %v82 = vmul.f32 %v53, %v80
    %vm83 = vcmask 31744
    %v84 = vsel %vm83, %v82, 0.0
    %85 = vadd.xlane.f32.xlu0 %v84
    %v86 = vpop.xlane.xlu0 %85
    %v87 = vsub.f32 0.0, %v86
    %v88 = vmul.f32 %v87, 1.442695
    %v89 = vpow.pop %v88
    %v90 = vadd.f32 %v89, 1.0
    %v91 = vrcp.pop %v90
    %v92 = vmul.f32 %v90, %v91
    %v93 = vsub.f32 1.0, %v92
    %v94 = vmul.f32 %v91, %v93
    %v95 = vadd.f32 %v91, %v94
    %vm96 = vweird.f32 %v90
    %vm97 = vweird.f32 %v91
    %vm98 = vmor %vm96, %vm97
    %v99 = vsel %vm98, %v91, %v95
    %v100 = vand.u32 2147483647, %v90
    %vm101 = vcmp.eq.f32.partialorder %v100, 8.507059e+37
    %v102 = vand.u32 %v90, 2147483648
    %v103 = vor.u32 1.1754944e-38, %v102
    %v104 = vsel %vm101, %v103, %v99
    %v105 = vmul.f32 1.0, %v104
    %s106 = sld [smem:[#allocation2]]
    %s107 = sld [smem:[#allocation2 + $0x1]]
    %v108 = vld [vmem:[%s5] sm:$0x1]
    %v110 = vperm.slane %v108, 0
    %v112 = vmul.f32 %v41, %v110
    %vm113 = vcmask 39936
    %v114 = vsel %vm113, %v112, 0.0
    %115 = vadd.xlane.f32.xlu0 %v114
    %v116 = vpop.xlane.xlu0 %115
    %v117 = vstv %s106
    %v118 = vmul.f32 %v105, %v117
    %v119 = vadd.f32 %v118, %v116
    %v120 = vstv %s107
    %v121 = vadd.f32 %v119, %v120
    %v122 = vsub.f32 0.0, %v121
    %v123 = vmul.f32 %v122, 1.442695
    %v124 = vpow.pop %v123
    %v125 = vadd.f32 %v124, 1.0
    %v126 = vrcp.pop %v125
    %v127 = vmul.f32 %v125, %v126
    %v128 = vsub.f32 1.0, %v127
    %v129 = vmul.f32 %v126, %v128
    %v130 = vadd.f32 %v126, %v129
    %vm131 = vweird.f32 %v125
    %vm132 = vweird.f32 %v126
    %vm133 = vmor %vm131, %vm132
    %v134 = vsel %vm133, %v126, %v130
    %v135 = vand.u32 2147483647, %v125
    %vm136 = vcmp.eq.f32.partialorder %v135, 8.507059e+37
    %v137 = vand.u32 %v125, 2147483648
    %v138 = vor.u32 1.1754944e-38, %v137
    %v139 = vsel %vm136, %v138, %v134
    %v140 = vmul.f32 1.0, %v139
    %vm141 = vcmask 7168
    %142 = vst.msk [vmem:[%s7] sm:$0xff] %vm141, %v140
    // Predicated region
    $region34: #{tpu_custom_call.1} parent=1 // pred_check
      _
    $region35: #{tpu_custom_call.1} parent=1 // pred_check_branch
      %144 = sbr.rel (0) target = $region37
    $region36: #{tpu_custom_call.1} parent=1 // pred_region
      _
    $region37: #{tpu_custom_call.1} parent=1 // pred_fallthru
      _
    // Predicated region
    $region38: #{tpu_custom_call.1} parent=1 // pred_check
      _
    $region39: #{tpu_custom_call.1} parent=1 // pred_check_branch
      %146 = sbr.rel (0) target = $region41
    $region40: #{tpu_custom_call.1} parent=1 // pred_region
      _
    $region41: #{tpu_custom_call.1} parent=1 // pred_fallthru
      _
    %147 = vsyncpa [#allocation3], 1

</llo_original>
